<compile_context>
chip_gen: v7x
topology: tpu7x:2x2x1
jax: 0.10.0
libtpu: 0.0.40
codegen_flags: <defaults>
</compile_context>

<pallas_src>
import functools

import jax
import jax.numpy as jnp
from jax.experimental import pallas as pl
from jax.experimental.pallas import tpu as pltpu

INPUT_SIZE = 240
H1, H2, OUT = 128, 64, 24


def _round_up(n, m):
    return ((n + m - 1) // m) * m


def _choose_block_b(batch, requested):
    """Pick a batch tile: big enough to amortise per-step overhead, aligned for the
    MXU / bf16 sublane packing, and leaving >= 2 grid steps for v7x's two cores."""
    bb = min(requested, batch)
    # Keep at least 2 grid steps when the batch allows, so the "parallel" axis gives
    # both v7x TensorCores work (irrelevant on single-TC v5e/v6e).
    half = pl.cdiv(batch, 2)
    if batch >= 32 and bb > half:
        bb = half
    # Alignment: 256 lines up with the v6e/v7x MXU M-tile; 16 matches bf16 sublane
    # packing; floor at 8 (f32 sublane minimum).
    if bb >= 256:
        bb = (bb // 256) * 256
    elif bb >= 16:
        bb = _round_up(bb, 16)
    else:
        bb = _round_up(max(bb, 8), 8)
    return bb


def _mlp_kernel(x_ref, w1_ref, b1_ref, w2_ref, b2_ref, w3_ref, b3_ref, o_ref):
    # Whole 3-layer MLP fused per batch tile: 3 bf16 MXU matmuls with f32 accumulation
    # + VPU bias adds / relus.  Weights/biases stay VMEM-resident across the grid.
    x = x_ref[...].astype(jnp.bfloat16)                                   # cast in-kernel
    h1 = jnp.dot(x, w1_ref[...], preferred_element_type=jnp.float32) + b1_ref[...]
    h1 = jnp.maximum(h1, 0.0).astype(jnp.bfloat16)
    h2 = jnp.dot(h1, w2_ref[...], preferred_element_type=jnp.float32) + b2_ref[...]
    h2 = jnp.maximum(h2, 0.0).astype(jnp.bfloat16)
    y = jnp.dot(h2, w3_ref[...], preferred_element_type=jnp.float32) + b3_ref[...]
    o_ref[...] = y.astype(o_ref.dtype)                                    # f32 [tb, 24]


@functools.partial(jax.jit, static_argnames=("block_b",))
def one_hidden_layer_reg(x, w1, b1, w2, b2, w3, b3, *, block_b=2048):
    """Fused forward.  x: [B, 240] (f32 or bf16); weights are [in, out]; biases [1, out].
    Sweep block_b: 2048-4096 (v5e/v6e), 4096-8192 (v7x, raise vmem_limit_bytes past 4K)."""
    B, D = x.shape
    assert D == INPUT_SIZE

    bb = _choose_block_b(B, block_b)
    grid = (pl.cdiv(B, bb),)

    # Weights go to the MXU in bf16 (no-op if the caller already pre-cast them with
    # prepare_params_bf16); biases stay f32 -- negligible bytes, keeps the add in f32.
    w1b = w1 if w1.dtype == jnp.bfloat16 else w1.astype(jnp.bfloat16)
    w2b = w2 if w2.dtype == jnp.bfloat16 else w2.astype(jnp.bfloat16)
    w3b = w3 if w3.dtype == jnp.bfloat16 else w3.astype(jnp.bfloat16)

    in_specs = [
        pl.BlockSpec((bb, D), lambda i: (i, 0)),           # x tile (batch-streamed)
        pl.BlockSpec((D, H1), lambda i: (0, 0)),           # W1 (VMEM-resident)
        pl.BlockSpec((1, H1), lambda i: (0, 0)),           # b1
        pl.BlockSpec((H1, H2), lambda i: (0, 0)),          # W2
        pl.BlockSpec((1, H2), lambda i: (0, 0)),           # b2
        pl.BlockSpec((H2, OUT), lambda i: (0, 0)),         # W3
        pl.BlockSpec((1, OUT), lambda i: (0, 0)),          # b3
    ]
    out_specs = pl.BlockSpec((bb, OUT), lambda i: (i, 0))

    flops = 2 * B * (D * H1 + H1 * H2 + H2 * OUT)
    bytes_accessed = (
        B * D * x.dtype.itemsize                            # x at its real dtype
        + (D * H1 + H1 * H2 + H2 * OUT) * 2                 # weights (bf16)
        + (H1 + H2 + OUT) * 4                               # biases (f32)
        + B * OUT * 4                                       # output (f32)
    )

    return pl.pallas_call(
        _mlp_kernel,
        out_shape=jax.ShapeDtypeStruct((B, OUT), jnp.float32),
        grid=grid,
        in_specs=in_specs,
        out_specs=out_specs,
        compiler_params=pltpu.CompilerParams(
            dimension_semantics=("parallel",),
            # v7x-safe scoped budget (32 MiB scoped / 64 MiB physical); a 4096-row f32
            # x tile double-buffered is ~8 MB. Raise this if you push block_b past ~4K.
            vmem_limit_bytes=32 * 1024 * 1024,
        ),
        cost_estimate=pl.CostEstimate(
            flops=flops, transcendentals=0, bytes_accessed=bytes_accessed
        ),
    )(x, w1b, b1, w2b, b2, w3b, b3)


def init_params(key):
    """Deterministic init mimicking nn.Linear default (uniform +/- 1/sqrt(fan_in)).
    Weights are stored [in, out] (transposed vs. PyTorch) so the kernel does x @ W."""
    ks = jax.random.split(key, 6)

    def linear(kw, kb, fan_in, fan_out):
        bound = 1.0 / jnp.sqrt(fan_in)
        w = jax.random.uniform(kw, (fan_in, fan_out), jnp.float32, -bound, bound)
        b = jax.random.uniform(kb, (1, fan_out), jnp.float32, -bound, bound)
        return w, b

    w1, b1 = linear(ks[0], ks[1], INPUT_SIZE, H1)
    w2, b2 = linear(ks[2], ks[3], H1, H2)
    w3, b3 = linear(ks[4], ks[5], H2, OUT)
    return w1, b1, w2, b2, w3, b3


def prepare_params_bf16(params):
    """One-time weight down-cast so the per-call path carries no converts."""
    w1, b1, w2, b2, w3, b3 = params
    return (w1.astype(jnp.bfloat16), b1, w2.astype(jnp.bfloat16), b2,
            w3.astype(jnp.bfloat16), b3)


def reference_bf16(x, w1, b1, w2, b2, w3, b3):
    """Pure-JAX reference mirroring the kernel's bf16-matmul / f32-accumulate path."""
    xb = x.astype(jnp.bfloat16)
    w1b, w2b, w3b = (w.astype(jnp.bfloat16) for w in (w1, w2, w3))
    h1 = jnp.dot(xb, w1b, preferred_element_type=jnp.float32) + b1
    h1 = jnp.maximum(h1, 0.0).astype(jnp.bfloat16)
    h2 = jnp.dot(h1, w2b, preferred_element_type=jnp.float32) + b2
    h2 = jnp.maximum(h2, 0.0).astype(jnp.bfloat16)
    return jnp.dot(h2, w3b, preferred_element_type=jnp.float32) + b3


def reference_f32(x, w1, b1, w2, b2, w3, b3):
    h1 = jnp.maximum(x @ w1 + b1, 0.0)
    h2 = jnp.maximum(h1 @ w2 + b2, 0.0)
    return h2 @ w3 + b3


if __name__ == "__main__":
    key = jax.random.PRNGKey(0)
    k_x, k_p = jax.random.split(key)

    # Small self-test: B=256 so the clamp picks a 128-row tile -> 2 grid steps, which
    # exercises both the streaming path and the even-grid (v7x two-core) preference.
    # Production use: large B with block_b 2048..8192.
    B = 256
    x = jax.random.normal(k_x, (B, INPUT_SIZE), dtype=jnp.float32)
    params = init_params(k_p)
    params_bf16 = prepare_params_bf16(params)   # hoist weight casts out of the call path

    out = one_hidden_layer_reg(x, *params_bf16)
    out = jax.block_until_ready(out)
    assert out.shape == (B, OUT), out.shape

    # Tight check vs. a reference matching the kernel's precision path.
    ref_b = reference_bf16(x, *params)
    assert jnp.allclose(out, ref_b, atol=2e-3, rtol=2e-3), float(
        jnp.max(jnp.abs(out - ref_b))
    )
    # Looser sanity check vs. the full-f32 PyTorch-equivalent forward.
    ref_f = reference_f32(x, *params)
    assert jnp.allclose(out, ref_f, atol=5e-2, rtol=5e-2), float(
        jnp.max(jnp.abs(out - ref_f))
    )
    print("KERNEL_OK")
</pallas_src>

<mosaic_0001>
module attributes {stable_mosaic.version = 11 : i64} {
  func.func @_mlp_kernel(%arg0: i32, %arg1: memref<128x240xf32, #tpu.memory_space<vmem>>, %arg2: memref<240x128xbf16, #tpu.memory_space<vmem>>, %arg3: memref<1x128xf32, #tpu.memory_space<vmem>>, %arg4: memref<128x64xbf16, #tpu.memory_space<vmem>>, %arg5: memref<1x64xf32, #tpu.memory_space<vmem>>, %arg6: memref<64x24xbf16, #tpu.memory_space<vmem>>, %arg7: memref<1x24xf32, #tpu.memory_space<vmem>>, %arg8: memref<128x24xf32, #tpu.memory_space<vmem>>) attributes {dimension_semantics = [#tpu.dimension_semantics<parallel>], iteration_bounds = array<i64: 2>, scalar_prefetch = 0 : i64, scratch_operands = 0 : i64, tpu.core_type = #tpu.core_type<tc>, window_params = [{transform_indices = @transform_0, window_bounds = array<i64: 128, 240>}, {pipeline_mode = #tpu.pipeline_mode<synchronous>, transform_indices = @transform_1, window_bounds = array<i64: 240, 128>}, {pipeline_mode = #tpu.pipeline_mode<synchronous>, transform_indices = @transform_2, window_bounds = array<i64: 1, 128>}, {pipeline_mode = #tpu.pipeline_mode<synchronous>, transform_indices = @transform_3, window_bounds = array<i64: 128, 64>}, {pipeline_mode = #tpu.pipeline_mode<synchronous>, transform_indices = @transform_4, window_bounds = array<i64: 1, 64>}, {pipeline_mode = #tpu.pipeline_mode<synchronous>, transform_indices = @transform_5, window_bounds = array<i64: 64, 24>}, {pipeline_mode = #tpu.pipeline_mode<synchronous>, transform_indices = @transform_6, window_bounds = array<i64: 1, 24>}, {transform_indices = @transform_7, window_bounds = array<i64: 128, 24>}]} {
    %c0 = arith.constant 0 : index
    %c0_0 = arith.constant 0 : index
    %0 = vector.load %arg1[%c0, %c0_0] : memref<128x240xf32, #tpu.memory_space<vmem>>, vector<128x240xf32>
    %1 = arith.truncf %0 : vector<128x240xf32> to vector<128x240xbf16>
    %c0_1 = arith.constant 0 : index
    %c0_2 = arith.constant 0 : index
    %2 = vector.load %arg2[%c0_1, %c0_2] : memref<240x128xbf16, #tpu.memory_space<vmem>>, vector<240x128xbf16>
    %cst = arith.constant dense<0.000000e+00> : vector<128x128xf32>
    %3 = tpu.matmul %1, %2, %cst {dimension_numbers = #tpu.dot_dimension_numbers<[1], [0], [0], [1], [0, 0, 1, 1], [], []>} : vector<128x240xbf16>, vector<240x128xbf16>, vector<128x128xf32> -> vector<128x128xf32>
    %c0_3 = arith.constant 0 : index
    %c0_4 = arith.constant 0 : index
    %4 = vector.load %arg3[%c0_3, %c0_4] : memref<1x128xf32, #tpu.memory_space<vmem>>, vector<1x128xf32>
    %5 = vector.broadcast %4 : vector<1x128xf32> to vector<128x128xf32>
    %6 = arith.addf %3, %5 : vector<128x128xf32>
    %cst_5 = arith.constant 0.000000e+00 : f32
    %7 = vector.broadcast %cst_5 : f32 to vector<128x128xf32>
    %8 = arith.maximumf %6, %7 : vector<128x128xf32>
    %9 = arith.truncf %8 : vector<128x128xf32> to vector<128x128xbf16>
    %c0_6 = arith.constant 0 : index
    %c0_7 = arith.constant 0 : index
    %10 = vector.load %arg4[%c0_6, %c0_7] : memref<128x64xbf16, #tpu.memory_space<vmem>>, vector<128x64xbf16>
    %cst_8 = arith.constant dense<0.000000e+00> : vector<128x64xf32>
    %11 = tpu.matmul %9, %10, %cst_8 {dimension_numbers = #tpu.dot_dimension_numbers<[1], [0], [0], [1], [0, 0, 1, 1], [], []>} : vector<128x128xbf16>, vector<128x64xbf16>, vector<128x64xf32> -> vector<128x64xf32>
    %c0_9 = arith.constant 0 : index
    %c0_10 = arith.constant 0 : index
    %12 = vector.load %arg5[%c0_9, %c0_10] : memref<1x64xf32, #tpu.memory_space<vmem>>, vector<1x64xf32>
    %13 = vector.broadcast %12 : vector<1x64xf32> to vector<128x64xf32>
    %14 = arith.addf %11, %13 : vector<128x64xf32>
    %cst_11 = arith.constant 0.000000e+00 : f32
    %15 = vector.broadcast %cst_11 : f32 to vector<128x64xf32>
    %16 = arith.maximumf %14, %15 : vector<128x64xf32>
    %17 = arith.truncf %16 : vector<128x64xf32> to vector<128x64xbf16>
    %c0_12 = arith.constant 0 : index
    %c0_13 = arith.constant 0 : index
    %18 = vector.load %arg6[%c0_12, %c0_13] : memref<64x24xbf16, #tpu.memory_space<vmem>>, vector<64x24xbf16>
    %cst_14 = arith.constant dense<0.000000e+00> : vector<128x24xf32>
    %19 = tpu.matmul %17, %18, %cst_14 {dimension_numbers = #tpu.dot_dimension_numbers<[1], [0], [0], [1], [0, 0, 1, 1], [], []>} : vector<128x64xbf16>, vector<64x24xbf16>, vector<128x24xf32> -> vector<128x24xf32>
    %c0_15 = arith.constant 0 : index
    %c0_16 = arith.constant 0 : index
    %20 = vector.load %arg7[%c0_15, %c0_16] : memref<1x24xf32, #tpu.memory_space<vmem>>, vector<1x24xf32>
    %21 = vector.broadcast %20 : vector<1x24xf32> to vector<128x24xf32>
    %22 = arith.addf %19, %21 : vector<128x24xf32>
    %c0_17 = arith.constant 0 : index
    %c0_18 = arith.constant 0 : index
    %23 = vector.load %arg8[%c0_17, %c0_18] : memref<128x24xf32, #tpu.memory_space<vmem>>, vector<128x24xf32>
    tpu.vector_store %arg8[%c0_17, %c0_18], %22 {strides = array<i32>} : memref<128x24xf32, #tpu.memory_space<vmem>>, vector<128x24xf32>,
    return
  }
  func.func @transform_0(%arg0: i32) -> (i32, i32) {
    %c0_i32 = arith.constant 0 : i32
    %c0_i32_0 = arith.constant 0 : i32
    return %arg0, %c0_i32 : i32, i32
  }
  func.func @transform_1(%arg0: i32) -> (i32, i32) {
    %c0_i32 = arith.constant 0 : i32
    %c0_i32_0 = arith.constant 0 : i32
    %c0_i32_1 = arith.constant 0 : i32
    return %c0_i32, %c0_i32_0 : i32, i32
  }
  func.func @transform_2(%arg0: i32) -> (i32, i32) {
    %c0_i32 = arith.constant 0 : i32
    %c0_i32_0 = arith.constant 0 : i32
    %c0_i32_1 = arith.constant 0 : i32
    return %c0_i32, %c0_i32_0 : i32, i32
  }
  func.func @transform_3(%arg0: i32) -> (i32, i32) {
    %c0_i32 = arith.constant 0 : i32
    %c0_i32_0 = arith.constant 0 : i32
    %c0_i32_1 = arith.constant 0 : i32
    return %c0_i32, %c0_i32_0 : i32, i32
  }
  func.func @transform_4(%arg0: i32) -> (i32, i32) {
    %c0_i32 = arith.constant 0 : i32
    %c0_i32_0 = arith.constant 0 : i32
    %c0_i32_1 = arith.constant 0 : i32
    return %c0_i32, %c0_i32_0 : i32, i32
  }
  func.func @transform_5(%arg0: i32) -> (i32, i32) {
    %c0_i32 = arith.constant 0 : i32
    %c0_i32_0 = arith.constant 0 : i32
    %c0_i32_1 = arith.constant 0 : i32
    return %c0_i32, %c0_i32_0 : i32, i32
  }
  func.func @transform_6(%arg0: i32) -> (i32, i32) {
    %c0_i32 = arith.constant 0 : i32
    %c0_i32_0 = arith.constant 0 : i32
    %c0_i32_1 = arith.constant 0 : i32
    return %c0_i32, %c0_i32_0 : i32, i32
  }
  func.func @transform_7(%arg0: i32) -> (i32, i32) {
    %c0_i32 = arith.constant 0 : i32
    %c0_i32_0 = arith.constant 0 : i32
    return %arg0, %c0_i32 : i32, i32
  }
}

</mosaic_0001>

<llo_original>
// kernel: one_hidden_layer_reg.1
$region0: #{one_hidden_layer_reg.1}
  #allocation0 [shape = 'u32[]', space=smem, size = 0x4, offset = 0x4, fixed_abs, tag = 'smem constant byte address 0x4 - core index']
  #allocation1 [shape = 'u32[144,128]{1,0:T(1,128)}', space=vmem, size = 0x12000, scoped, tag = 'internal scratch']
  %s0 = inlined_call_operand.vmem [shape: f32[256,240], index: 0, kind: input, shape index: {}]
  %s1 = inlined_call_operand.vmem [shape: bf16[240,128], index: 1, kind: input, shape index: {}]
  %s2 = inlined_call_operand.vmem [shape: f32[1,128], index: 2, kind: input, shape index: {}]
  %s3 = inlined_call_operand.vmem [shape: bf16[128,64], index: 3, kind: input, shape index: {}]
  %s4 = inlined_call_operand.vmem [shape: f32[1,64], index: 4, kind: input, shape index: {}]
  %s5 = inlined_call_operand.vmem [shape: bf16[64,24], index: 5, kind: input, shape index: {}]
  %s6 = inlined_call_operand.vmem [shape: f32[1,24], index: 6, kind: input, shape index: {}]
  %s7 = inlined_call_operand.vmem [shape: f32[256,24], index: 7, kind: output, shape index: {}]
  %s8 = sld [smem:[#allocation0]]
  $region61: #{one_hidden_layer_reg.1} parent=0
    _
  %s10 = ssub.s32 1, %s8
  %s11 = scalar_select 0, %s10, %s8
  loop: start=0, step=1, limit=4
  $region2: #{one_hidden_layer_reg.1} parent=0 // loop_pre_header
    _
  $region3: #{one_hidden_layer_reg.1} parent=0 // loop_header
    %s13 = sphi 0, %s17
    %p14 = scmp.ge.s32.totalorder %s13, 4
    %s23 = sphi 0, %s25
    %s26 = sphi 0, %s23
    %s27 = sphi 0, %s26
    %s43 = sphi 0, %s27
    %s47 = sphi 0, %s47
    %s49 = sphi 0, %s47
    %s50 = sphi 0, %s49
    %s64 = sphi 0, %s50
    %s68 = sphi 0, %s68
    %s70 = sphi 0, %s68
    %s71 = sphi 0, %s70
    %s85 = sphi 0, %s71
    %s89 = sphi 0, %s89
    %s91 = sphi 0, %s89
    %s92 = sphi 0, %s91
    %s106 = sphi 0, %s92
    %s110 = sphi 0, %s110
    %s112 = sphi 0, %s110
    %s113 = sphi 0, %s112
    %s127 = sphi 0, %s113
    %s131 = sphi 0, %s131
    %s133 = sphi 0, %s131
    %s134 = sphi 0, %s133
    %s148 = sphi 0, %s134
    %s152 = sphi 0, %s152
    %s154 = sphi 0, %s152
    %s155 = sphi 0, %s154
    %s169 = sphi 0, %s155
    %s175 = sphi 0, %s177
    %s178 = sphi 0, %s175
    %s179 = sphi 0, %s178
    %s195 = sphi 0, %s179
  $region4: #{one_hidden_layer_reg.1} parent=0 // loop_header_branch
    %16 = sbr.rel (%p14) target = $region8
  $region5: #{one_hidden_layer_reg.1} parent=0 // loop_body
    %s18 = ssub.s32 %s13, 1
    %s19 = ssub.s32 %s13, 2
    %s20 = sadd.s32 %s13, 1
    %s21 = ssub.s32 %s13, %s20
    %p22 = scmp.eq.s32.totalorder %s21, 0
    %s24 = sadd.s32 %s23, 1
    %s25 = scalar_select %p22, %s23, %s24
    %p28 = pneg %p22
    %p29 = scmp.eq.s32.totalorder %s13, 1
    %p30 = por %p28, %p29
    %p31 = scmp.ne.s32.totalorder %s23, %s26
    %p32 = scmp.eq.s32.totalorder %s13, 0
    %p33 = por %p31, %p32
    %p34 = scmp.ne.s32.totalorder %s23, %s26
    %p35 = scmp.eq.s32.totalorder %s18, 1
    %p36 = por %p34, %p35
    %p37 = scmp.ne.s32.totalorder %s26, %s27
    %p38 = scmp.eq.s32.totalorder %s18, 0
    %p39 = por %p37, %p38
    %p40 = scmp.ne.s32.totalorder %s26, %s27
    %p41 = scmp.eq.s32.totalorder %s19, 1
    %p42 = por %p40, %p41
    %p44 = scmp.ne.s32.totalorder %s27, %s43
    %p45 = scmp.eq.s32.totalorder %s19, 0
    %p46 = por %p44, %p45
    %s48 = sadd.s32 %s47, 1
    %p51 = scmp.eq.s32.totalorder %s13, 1
    %p52 = scmp.ne.s32.totalorder %s47, %s49
    %p53 = scmp.eq.s32.totalorder %s13, 0
    %p54 = por %p52, %p53
    %p55 = scmp.ne.s32.totalorder %s47, %s49
    %p56 = scmp.eq.s32.totalorder %s18, 1
    %p57 = por %p55, %p56
    %p58 = scmp.ne.s32.totalorder %s49, %s50
    %p59 = scmp.eq.s32.totalorder %s18, 0
    %p60 = por %p58, %p59
    %p61 = scmp.ne.s32.totalorder %s49, %s50
    %p62 = scmp.eq.s32.totalorder %s19, 1
    %p63 = por %p61, %p62
    %p65 = scmp.ne.s32.totalorder %s50, %s64
    %p66 = scmp.eq.s32.totalorder %s19, 0
    %p67 = por %p65, %p66
    %s69 = sadd.s32 %s68, 1
    %p72 = scmp.eq.s32.totalorder %s13, 1
    %p73 = scmp.ne.s32.totalorder %s68, %s70
    %p74 = scmp.eq.s32.totalorder %s13, 0
    %p75 = por %p73, %p74
    %p76 = scmp.ne.s32.totalorder %s68, %s70
    %p77 = scmp.eq.s32.totalorder %s18, 1
    %p78 = por %p76, %p77
    %p79 = scmp.ne.s32.totalorder %s70, %s71
    %p80 = scmp.eq.s32.totalorder %s18, 0
    %p81 = por %p79, %p80
    %p82 = scmp.ne.s32.totalorder %s70, %s71
    %p83 = scmp.eq.s32.totalorder %s19, 1
    %p84 = por %p82, %p83
    %p86 = scmp.ne.s32.totalorder %s71, %s85
    %p87 = scmp.eq.s32.totalorder %s19, 0
    %p88 = por %p86, %p87
    %s90 = sadd.s32 %s89, 1
    %p93 = scmp.eq.s32.totalorder %s13, 1
    %p94 = scmp.ne.s32.totalorder %s89, %s91
    %p95 = scmp.eq.s32.totalorder %s13, 0
    %p96 = por %p94, %p95
    %p97 = scmp.ne.s32.totalorder %s89, %s91
    %p98 = scmp.eq.s32.totalorder %s18, 1
    %p99 = por %p97, %p98
    %p100 = scmp.ne.s32.totalorder %s91, %s92
    %p101 = scmp.eq.s32.totalorder %s18, 0
    %p102 = por %p100, %p101
    %p103 = scmp.ne.s32.totalorder %s91, %s92
    %p104 = scmp.eq.s32.totalorder %s19, 1
    %p105 = por %p103, %p104
    %p107 = scmp.ne.s32.totalorder %s92, %s106
    %p108 = scmp.eq.s32.totalorder %s19, 0
    %p109 = por %p107, %p108
    %s111 = sadd.s32 %s110, 1
    %p114 = scmp.eq.s32.totalorder %s13, 1
    %p115 = scmp.ne.s32.totalorder %s110, %s112
    %p116 = scmp.eq.s32.totalorder %s13, 0
    %p117 = por %p115, %p116
    %p118 = scmp.ne.s32.totalorder %s110, %s112
    %p119 = scmp.eq.s32.totalorder %s18, 1
    %p120 = por %p118, %p119
    %p121 = scmp.ne.s32.totalorder %s112, %s113
    %p122 = scmp.eq.s32.totalorder %s18, 0
    %p123 = por %p121, %p122
    %p124 = scmp.ne.s32.totalorder %s112, %s113
    %p125 = scmp.eq.s32.totalorder %s19, 1
    %p126 = por %p124, %p125
    %p128 = scmp.ne.s32.totalorder %s113, %s127
    %p129 = scmp.eq.s32.totalorder %s19, 0
    %p130 = por %p128, %p129
    %s132 = sadd.s32 %s131, 1
    %p135 = scmp.eq.s32.totalorder %s13, 1
    %p136 = scmp.ne.s32.totalorder %s131, %s133
    %p137 = scmp.eq.s32.totalorder %s13, 0
    %p138 = por %p136, %p137
    %p139 = scmp.ne.s32.totalorder %s131, %s133
    %p140 = scmp.eq.s32.totalorder %s18, 1
    %p141 = por %p139, %p140
    %p142 = scmp.ne.s32.totalorder %s133, %s134
    %p143 = scmp.eq.s32.totalorder %s18, 0
    %p144 = por %p142, %p143
    %p145 = scmp.ne.s32.totalorder %s133, %s134
    %p146 = scmp.eq.s32.totalorder %s19, 1
    %p147 = por %p145, %p146
    %p149 = scmp.ne.s32.totalorder %s134, %s148
    %p150 = scmp.eq.s32.totalorder %s19, 0
    %p151 = por %p149, %p150
    %s153 = sadd.s32 %s152, 1
    %p156 = scmp.eq.s32.totalorder %s13, 1
    %p157 = scmp.ne.s32.totalorder %s152, %s154
    %p158 = scmp.eq.s32.totalorder %s13, 0
    %p159 = por %p157, %p158
    %p160 = scmp.ne.s32.totalorder %s152, %s154
    %p161 = scmp.eq.s32.totalorder %s18, 1
    %p162 = por %p160, %p161
    %p163 = scmp.ne.s32.totalorder %s154, %s155
    %p164 = scmp.eq.s32.totalorder %s18, 0
    %p165 = por %p163, %p164
    %p166 = scmp.ne.s32.totalorder %s154, %s155
    %p167 = scmp.eq.s32.totalorder %s19, 1
    %p168 = por %p166, %p167
    %p170 = scmp.ne.s32.totalorder %s155, %s169
    %p171 = scmp.eq.s32.totalorder %s19, 0
    %p172 = por %p170, %p171
    %s173 = ssub.s32 %s13, %s20
    %p174 = scmp.eq.s32.totalorder %s173, 0
    %s176 = sadd.s32 %s175, 1
    %s177 = scalar_select %p174, %s175, %s176
    %p180 = pneg %p174
    %p181 = scmp.eq.s32.totalorder %s13, 1
    %p182 = por %p180, %p181
    %p183 = scmp.ne.s32.totalorder %s175, %s178
    %p184 = scmp.eq.s32.totalorder %s13, 0
    %p185 = por %p183, %p184
    %p186 = scmp.ne.s32.totalorder %s175, %s178
    %p187 = scmp.eq.s32.totalorder %s18, 1
    %p188 = por %p186, %p187
    %p189 = scmp.ne.s32.totalorder %s178, %s179
    %p190 = scmp.eq.s32.totalorder %s18, 0
    %p191 = por %p189, %p190
    %p192 = scmp.ne.s32.totalorder %s178, %s179
    %p193 = scmp.eq.s32.totalorder %s19, 1
    %p194 = por %p192, %p193
    %p196 = scmp.ne.s32.totalorder %s179, %s195
    %p197 = scmp.eq.s32.totalorder %s19, 0
    %p198 = por %p196, %p197
    %p199 = scmp.le.s32.totalorder 1, %s13
    %p200 = scmp.lt.s32.totalorder %s13, 3
    %p201 = pnand %p199, %p200
    %p202 = pneg %p201
    // Predicated region
    $region9: #{one_hidden_layer_reg.1} parent=5 // pred_check
      _
    $region10: #{one_hidden_layer_reg.1} parent=5 // pred_check_branch
      %204 = sbr.rel (%p201) target = $region12
    $region11: #{one_hidden_layer_reg.1} parent=5 // pred_region
      %s205 = ssub.s32 %s13, 1
      // Predicated region
      $region13: #{one_hidden_layer_reg.1} parent=11 // pred_check
        %p206 = pneg %p60
      $region14: #{one_hidden_layer_reg.1} parent=11 // pred_check_branch
        %208 = sbr.rel (%p206) target = $region16
      $region15: #{one_hidden_layer_reg.1} parent=11 // pred_region
        _
      $region16: #{one_hidden_layer_reg.1} parent=11 // pred_fallthru
        _
      // Predicated region
      $region17: #{one_hidden_layer_reg.1} parent=11 // pred_check
        %p209 = pneg %p81
      $region18: #{one_hidden_layer_reg.1} parent=11 // pred_check_branch
        %211 = sbr.rel (%p209) target = $region20
      $region19: #{one_hidden_layer_reg.1} parent=11 // pred_region
        _
      $region20: #{one_hidden_layer_reg.1} parent=11 // pred_fallthru
        _
      // Predicated region
      $region21: #{one_hidden_layer_reg.1} parent=11 // pred_check
        %p212 = pneg %p102
      $region22: #{one_hidden_layer_reg.1} parent=11 // pred_check_branch
        %214 = sbr.rel (%p212) target = $region24
      $region23: #{one_hidden_layer_reg.1} parent=11 // pred_region
        _
      $region24: #{one_hidden_layer_reg.1} parent=11 // pred_fallthru
        _
      // Predicated region
      $region25: #{one_hidden_layer_reg.1} parent=11 // pred_check
        %p215 = pneg %p123
      $region26: #{one_hidden_layer_reg.1} parent=11 // pred_check_branch
        %217 = sbr.rel (%p215) target = $region28
      $region27: #{one_hidden_layer_reg.1} parent=11 // pred_region
        _
      $region28: #{one_hidden_layer_reg.1} parent=11 // pred_fallthru
        _
      // Predicated region
      $region29: #{one_hidden_layer_reg.1} parent=11 // pred_check
        %p218 = pneg %p144
      $region30: #{one_hidden_layer_reg.1} parent=11 // pred_check_branch
        %220 = sbr.rel (%p218) target = $region32
      $region31: #{one_hidden_layer_reg.1} parent=11 // pred_region
        _
      $region32: #{one_hidden_layer_reg.1} parent=11 // pred_fallthru
        _
      // Predicated region
      $region33: #{one_hidden_layer_reg.1} parent=11 // pred_check
        %p221 = pneg %p165
      $region34: #{one_hidden_layer_reg.1} parent=11 // pred_check_branch
        %223 = sbr.rel (%p221) target = $region36
      $region35: #{one_hidden_layer_reg.1} parent=11 // pred_region
        _
      $region36: #{one_hidden_layer_reg.1} parent=11 // pred_fallthru
        _
    $region12: #{one_hidden_layer_reg.1} parent=5 // pred_fallthru
      _
    %p224 = scmp.lt.s32.totalorder %s13, 2
    // Predicated region
    $region37: #{one_hidden_layer_reg.1} parent=5 // pred_check
      %p225 = pneg %p224
    $region38: #{one_hidden_layer_reg.1} parent=5 // pred_check_branch
      %227 = sbr.rel (%p225) target = $region40
    $region39: #{one_hidden_layer_reg.1} parent=5 // pred_region
      // Predicated region
      $region41: #{one_hidden_layer_reg.1} parent=39 // pred_check
        %p228 = pneg %p33
      $region42: #{one_hidden_layer_reg.1} parent=39 // pred_check_branch
        %230 = sbr.rel (%p228) target = $region44
      $region43: #{one_hidden_layer_reg.1} parent=39 // pred_region
        %s231 = smul.u32 16, %s13
        %p232 = scmp.lt.s32.totalorder %s231, 31
        %s233 = scalar_select %p232, %s231, 31
        %s234 = smul.addr %s233, 2
        %s235 = smul.addr %s234, 8
        %s236 = scalar_lea.vmem %s0, %s235
        %s237 = smul.u32 16, %s13
      $region44: #{one_hidden_layer_reg.1} parent=39 // pred_fallthru
        _
    $region40: #{one_hidden_layer_reg.1} parent=5 // pred_fallthru
      _
    %p238 = scmp.le.s32.totalorder 1, %s13
    %p239 = scmp.lt.s32.totalorder %s13, 3
    %p240 = pnand %p238, %p239
    %p241 = pneg %p240
    // Predicated region
    $region45: #{one_hidden_layer_reg.1} parent=5 // pred_check
      _
    $region46: #{one_hidden_layer_reg.1} parent=5 // pred_check_branch
      %243 = sbr.rel (%p240) target = $region48
    $region47: #{one_hidden_layer_reg.1} parent=5 // pred_region
      %s244 = ssub.s32 %s13, 1
      %s245 = smul.u32 16, %s18
      %p246 = scmp.lt.s32.totalorder %s245, 31
      %s247 = scalar_select %p246, %s245, 31
      %s248 = smul.addr %s247, 2
      %s249 = smul.addr %s248, 8
      %s250 = scalar_lea.vmem %s0, %s249
      %p251 = pneg %p39
      %p252 = pneg %p36
      %p253 = pneg %p60
      %p254 = pneg %p57
      %p255 = pneg %p81
      %p256 = pneg %p78
      %p257 = pneg %p102
      %p258 = pneg %p99
      %p259 = pneg %p123
      %p260 = pneg %p120
      %p261 = pneg %p144
      %p262 = pneg %p141
      %p263 = pneg %p165
      %p264 = pneg %p162
      %p265 = pneg %p191
      %p266 = pneg %p188
      %s267 = smul.u32 16, %s18
      %p268 = scmp.lt.s32.totalorder %s267, 31
      %s269 = scalar_select %p268, %s267, 31
      %s270 = smul.addr %s269, 8
      %s271 = scalar_lea.vmem %s7, %s270
      %s272 = smul.u32 16, %s18
      %p273 = scmp.lt.s32.totalorder %s272, 31
      %s274 = scalar_select %p273, %s272, 31
      %s275 = smul.addr %s274, 2
      %s276 = smul.addr %s275, 8
      %s277 = scalar_lea.vmem %s0, %s276
      %s278 = smul.u32 16, %s18
      %s279 = smul.u32 16, %s18
      %p280 = scmp.lt.s32.totalorder %s279, 31
      %s281 = scalar_select %p280, %s279, 31
      %s282 = smul.addr %s281, 8
      %s283 = scalar_lea.vmem %s7, %s282
      %s284 = smul.u32 16, %s18
      %v286 = vld [vmem:[%s277] sm:$0xff]
      %v287 = vld [vmem:[%s277 + $0x8] sm:$0xff]
      %v288 = vld [vmem:[%s277 + $0x10] sm:$0xff]
      %v289 = vld [vmem:[%s277 + $0x18] sm:$0xff]
      %v290 = vld [vmem:[%s277 + $0x20] sm:$0xff]
      %v291 = vld [vmem:[%s277 + $0x28] sm:$0xff]
      %v292 = vld [vmem:[%s277 + $0x30] sm:$0xff]
      %v293 = vld [vmem:[%s277 + $0x38] sm:$0xff]
      %v294 = vld [vmem:[%s277 + $0x40] sm:$0xff]
      %v295 = vld [vmem:[%s277 + $0x48] sm:$0xff]
      %v296 = vld [vmem:[%s277 + $0x50] sm:$0xff]
      %v297 = vld [vmem:[%s277 + $0x58] sm:$0xff]
      %v298 = vld [vmem:[%s277 + $0x60] sm:$0xff]
      %v299 = vld [vmem:[%s277 + $0x68] sm:$0xff]
      %v300 = vld [vmem:[%s277 + $0x70] sm:$0xff]
      %v301 = vld [vmem:[%s277 + $0x78] sm:$0xff]
      %v302 = vld [vmem:[%s277 + $0x80] sm:$0xff]
      %v303 = vld [vmem:[%s277 + $0x88] sm:$0xff]
      %v304 = vld [vmem:[%s277 + $0x90] sm:$0xff]
      %v305 = vld [vmem:[%s277 + $0x98] sm:$0xff]
      %v306 = vld [vmem:[%s277 + $0xa0] sm:$0xff]
      %v307 = vld [vmem:[%s277 + $0xa8] sm:$0xff]
      %v308 = vld [vmem:[%s277 + $0xb0] sm:$0xff]
      %v309 = vld [vmem:[%s277 + $0xb8] sm:$0xff]
      %v310 = vld [vmem:[%s277 + $0xc0] sm:$0xff]
      %v311 = vld [vmem:[%s277 + $0xc8] sm:$0xff]
      %v312 = vld [vmem:[%s277 + $0xd0] sm:$0xff]
      %v313 = vld [vmem:[%s277 + $0xd8] sm:$0xff]
      %v314 = vld [vmem:[%s277 + $0xe0] sm:$0xff]
      %v315 = vld [vmem:[%s277 + $0xe8] sm:$0xff]
      %v316 = vld [vmem:[%s277 + $0xf0] sm:$0xff]
      %v317 = vld [vmem:[%s277 + $0xf8] sm:$0xff]
      %v318 = vpack.c.bf16 %v288, %v286
      %v319 = vpack.c.bf16 %v289, %v287
      %v320 = vpack.c.bf16 %v292, %v290
      %v321 = vpack.c.bf16 %v293, %v291
      %v322 = vpack.c.bf16 %v296, %v294
      %v323 = vpack.c.bf16 %v297, %v295
      %v324 = vpack.c.bf16 %v300, %v298
      %v325 = vpack.c.bf16 %v301, %v299
      %v326 = vpack.c.bf16 %v304, %v302
      %v327 = vpack.c.bf16 %v305, %v303
      %v328 = vpack.c.bf16 %v308, %v306
      %v329 = vpack.c.bf16 %v309, %v307
      %v330 = vpack.c.bf16 %v312, %v310
      %v331 = vpack.c.bf16 %v313, %v311
      %v332 = vpack.c.bf16 %v316, %v314
      %v333 = vpack.c.bf16 %v317, %v315
      %v334 = vld [vmem:[%s1] sm:$0xf]
      %v335 = vld [vmem:[%s1 + $0x4] sm:$0xf]
      %v336 = vld [vmem:[%s1 + $0x8] sm:$0xf]
      %v337 = vld [vmem:[%s1 + $0xc] sm:$0xf]
      %v338 = vld [vmem:[%s1 + $0x10] sm:$0xf]
      %v339 = vld [vmem:[%s1 + $0x14] sm:$0xf]
      %v340 = vld [vmem:[%s1 + $0x18] sm:$0xf]
      %v341 = vld [vmem:[%s1 + $0x1c] sm:$0xf]
      %v342 = vld [vmem:[%s1 + $0x20] sm:$0xf]
      %v343 = vld [vmem:[%s1 + $0x24] sm:$0xf]
      %v344 = vld [vmem:[%s1 + $0x28] sm:$0xf]
      %v345 = vld [vmem:[%s1 + $0x2c] sm:$0xf]
      %v346 = vld [vmem:[%s1 + $0x30] sm:$0xf]
      %v347 = vld [vmem:[%s1 + $0x34] sm:$0xf]
      %v348 = vld [vmem:[%s1 + $0x38] sm:$0xf]
      %v349 = vld [vmem:[%s1 + $0x3c] sm:$0xf]
      %v350 = vld [vmem:[%s1 + $0x40] sm:$0xf]
      %v351 = vld [vmem:[%s1 + $0x44] sm:$0xf]
      %v352 = vld [vmem:[%s1 + $0x48] sm:$0xf]
      %v353 = vld [vmem:[%s1 + $0x4c] sm:$0xf]
      %v354 = vld [vmem:[%s1 + $0x50] sm:$0xf]
      %v355 = vld [vmem:[%s1 + $0x54] sm:$0xf]
      %v356 = vld [vmem:[%s1 + $0x58] sm:$0xf]
      %v357 = vld [vmem:[%s1 + $0x5c] sm:$0xf]
      %v358 = vld [vmem:[%s1 + $0x60] sm:$0xf]
      %v359 = vld [vmem:[%s1 + $0x64] sm:$0xf]
      %v360 = vld [vmem:[%s1 + $0x68] sm:$0xf]
      %v361 = vld [vmem:[%s1 + $0x6c] sm:$0xf]
      %v362 = vld [vmem:[%s1 + $0x70] sm:$0xf]
      %v363 = vld [vmem:[%s1 + $0x74] sm:$0xf]
      %v364 = vld [vmem:[%s2] sm:$0x1]
      %v366 = vlaneseq
      %v367 = vshrl.u32 %v366, 7
      %v368 = vsub.s32 0, %v367
      %v369 = vrot.slane %v364, %v368
      %v401 = vunpack.c.l.b16 %v334
      %v402 = vunpack.c.l.b16 %v335
      %v403 = vunpack.c.l.b16 %v336
      %v404 = vunpack.c.l.b16 %v337
      %v405 = vunpack.c.l.b16 %v338
      %v406 = vunpack.c.l.b16 %v339
      %v407 = vunpack.c.l.b16 %v340
      %v408 = vunpack.c.l.b16 %v341
      %v409 = vunpack.c.l.b16 %v342
      %v410 = vunpack.c.l.b16 %v343
      %v411 = vunpack.c.l.b16 %v344
      %v412 = vunpack.c.l.b16 %v345
      %v413 = vunpack.c.l.b16 %v346
      %v414 = vunpack.c.l.b16 %v347
      %v415 = vunpack.c.l.b16 %v348
      %v416 = vunpack.c.l.b16 %v349
      %v417 = vunpack.c.l.b16 %v350
      %v418 = vunpack.c.l.b16 %v351
      %v419 = vunpack.c.l.b16 %v352
      %v420 = vunpack.c.l.b16 %v353
      %v421 = vunpack.c.l.b16 %v354
      %v422 = vunpack.c.l.b16 %v355
      %v423 = vunpack.c.l.b16 %v356
      %v424 = vunpack.c.l.b16 %v357
      %v425 = vunpack.c.l.b16 %v358
      %v426 = vunpack.c.l.b16 %v359
      %v427 = vunpack.c.l.b16 %v360
      %v428 = vunpack.c.l.b16 %v361
      %v429 = vunpack.c.l.b16 %v362
      %v430 = vunpack.c.l.b16 %v363
      %v431 = vpack.c.b16 %v402, %v401
      %v432 = vpack.c.b16 %v404, %v403
      %v433 = vpack.c.b16 %v406, %v405
      %v434 = vpack.c.b16 %v408, %v407
      %v435 = vpack.c.b16 %v410, %v409
      %v436 = vpack.c.b16 %v412, %v411
      %v437 = vpack.c.b16 %v414, %v413
      %v438 = vpack.c.b16 %v416, %v415
      %v439 = vpack.c.b16 %v418, %v417
      %v440 = vpack.c.b16 %v420, %v419
      %v441 = vpack.c.b16 %v422, %v421
      %v442 = vpack.c.b16 %v424, %v423
      %v443 = vpack.c.b16 %v426, %v425
      %v444 = vpack.c.b16 %v428, %v427
      %v445 = vpack.c.b16 %v430, %v429
      %vm461 = vcmask 916480
      %v463 = vsel %vm461, %v319, 0
      %v466 = vsel %vm461, %v321, 0
      %v469 = vsel %vm461, %v323, 0
      %v472 = vsel %vm461, %v325, 0
      %v475 = vsel %vm461, %v327, 0
      %v478 = vsel %vm461, %v329, 0
      %v481 = vsel %vm461, %v331, 0
      %v484 = vsel %vm461, %v333, 0
      %486 = vmatprep.subr.bf16.mxu0 0
      %487 = vmatpush1.bf16.msra.mxu0 %v431
      %488 = vmatprep.subr.bf16.mxu0 0
      %489 = vmatpush1.bf16.msra.mxu0 %v432
      %490 = vmatprep.subr.bf16.mxu0 0
      %491 = vmatpush1.bf16.msra.mxu0 %v433
      %492 = vmatprep.subr.bf16.mxu0 0
      %493 = vmatpush1.bf16.msra.mxu0 %v434
      %494 = vmatprep.subr.bf16.mxu0 0
      %495 = vmatpush1.bf16.msra.mxu0 %v435
      %496 = vmatprep.subr.bf16.mxu0 0
      %497 = vmatpush1.bf16.msra.mxu0 %v436
      %498 = vmatprep.subr.bf16.mxu0 0
      %499 = vmatpush1.bf16.msra.mxu0 %v437
      %500 = vmatprep.subr.bf16.mxu0 0
      %501 = vmatpush1.bf16.msra.mxu0 %v438
      %502 = vmatprep.subr.bf16.mxu0 0
      %503 = vmatpush1.bf16.msra.mxu0 %v439
      %504 = vmatprep.subr.bf16.mxu0 0
      %505 = vmatpush1.bf16.msra.mxu0 %v440
      %506 = vmatprep.subr.bf16.mxu0 0
      %507 = vmatpush1.bf16.msra.mxu0 %v441
      %508 = vmatprep.subr.bf16.mxu0 0
      %509 = vmatpush1.bf16.msra.mxu0 %v442
      %510 = vmatprep.subr.bf16.mxu0 0
      %511 = vmatpush1.bf16.msra.mxu0 %v443
      %512 = vmatprep.subr.bf16.mxu0 0
      %513 = vmatpush1.bf16.msra.mxu0 %v444
      %514 = vmatprep.subr.bf16.mxu0 0
      %515 = vmatpush1.bf16.msra.mxu0 %v445
      %516 = vmatprep.subr.bf16.mxu0 0
      %517 = vmatpush1.bf16.msra.mxu0 0
      %518 = vmatprep.mubr.bf16.mxu0 %v463
      %519 = vmatmul.mubr.bf16.gmra.mrb[0].mxu0 %v318
      %v520 = vpop.f32.mrb[0].mxu0
      %v521 = vadd.f32 %v369, %v520
      %v522 = vpop.f32.mrb[0].mxu0
      %v523 = vpop.f32.mrb[0].mxu0
      %v524 = vadd.f32 %v369, %v523
      %v525 = vpop.f32.mrb[0].mxu0
      %526 = vmatprep.mubr.bf16.mxu0 %v466
      %527 = vmatmul.mubr.bf16.gmra.mrb[0].mxu0 %v320
      %v528 = vpop.f32.mrb[0].mxu0
      %v529 = vadd.f32 %v369, %v528
      %v530 = vpop.f32.mrb[0].mxu0
      %v531 = vpop.f32.mrb[0].mxu0
      %v532 = vadd.f32 %v369, %v531
      %v533 = vpop.f32.mrb[0].mxu0
      %534 = vmatprep.mubr.bf16.mxu0 %v469
      %535 = vmatmul.mubr.bf16.gmra.mrb[0].mxu0 %v322
      %v536 = vpop.f32.mrb[0].mxu0
      %v537 = vadd.f32 %v369, %v536
      %v538 = vpop.f32.mrb[0].mxu0
      %v539 = vpop.f32.mrb[0].mxu0
      %v540 = vadd.f32 %v369, %v539
      %v541 = vpop.f32.mrb[0].mxu0
      %542 = vmatprep.mubr.bf16.mxu0 %v472
      %543 = vmatmul.mubr.bf16.gmra.mrb[0].mxu0 %v324
      %v544 = vpop.f32.mrb[0].mxu0
      %v545 = vadd.f32 %v369, %v544
      %v546 = vpop.f32.mrb[0].mxu0
      %v547 = vpop.f32.mrb[0].mxu0
      %v548 = vadd.f32 %v369, %v547
      %v549 = vpop.f32.mrb[0].mxu0
      %550 = vmatprep.mubr.bf16.mxu0 %v475
      %551 = vmatmul.mubr.bf16.gmra.mrb[0].mxu0 %v326
      %v552 = vpop.f32.mrb[0].mxu0
      %v553 = vadd.f32 %v369, %v552
      %v554 = vpop.f32.mrb[0].mxu0
      %v555 = vpop.f32.mrb[0].mxu0
      %v556 = vadd.f32 %v369, %v555
      %v557 = vpop.f32.mrb[0].mxu0
      %558 = vmatprep.mubr.bf16.mxu0 %v478
      %559 = vmatmul.mubr.bf16.gmra.mrb[0].mxu0 %v328
      %v560 = vpop.f32.mrb[0].mxu0
      %v561 = vadd.f32 %v369, %v560
      %v562 = vpop.f32.mrb[0].mxu0
      %v563 = vpop.f32.mrb[0].mxu0
      %v564 = vadd.f32 %v369, %v563
      %v565 = vpop.f32.mrb[0].mxu0
      %566 = vmatprep.mubr.bf16.mxu0 %v481
      %567 = vmatmul.mubr.bf16.gmra.mrb[0].mxu0 %v330
      %v568 = vpop.f32.mrb[0].mxu0
      %v569 = vadd.f32 %v369, %v568
      %v570 = vpop.f32.mrb[0].mxu0
      %v571 = vpop.f32.mrb[0].mxu0
      %v572 = vadd.f32 %v369, %v571
      %v573 = vpop.f32.mrb[0].mxu0
      %574 = vmatprep.mubr.bf16.mxu0 %v484
      %575 = vmatmul.mubr.bf16.gmra.mrb[0].mxu0 %v332
      %v576 = vpop.f32.mrb[0].mxu0
      %v577 = vadd.f32 %v369, %v576
      %v578 = vpop.f32.mrb[0].mxu0
      %v579 = vpop.f32.mrb[0].mxu0
      %v580 = vadd.f32 %v369, %v579
      %v581 = vpop.f32.mrb[0].mxu0
      %582 = vdwg.mxu0
      %v583 = vmax.f32 %v521, 0.0
      %v584 = vmax.f32 %v524, 0.0
      %v585 = vmax.f32 %v529, 0.0
      %v586 = vmax.f32 %v532, 0.0
      %v587 = vmax.f32 %v537, 0.0
      %v588 = vmax.f32 %v540, 0.0
      %v589 = vmax.f32 %v545, 0.0
      %v590 = vmax.f32 %v548, 0.0
      %v591 = vmax.f32 %v553, 0.0
      %v592 = vmax.f32 %v556, 0.0
      %v593 = vmax.f32 %v561, 0.0
      %v594 = vmax.f32 %v564, 0.0
      %v595 = vmax.f32 %v569, 0.0
      %v596 = vmax.f32 %v572, 0.0
      %v597 = vmax.f32 %v577, 0.0
      %v598 = vmax.f32 %v580, 0.0
      %v599 = vpack.c.bf16 %v584, %v583
      %v600 = vpack.c.bf16 %v586, %v585
      %v601 = vpack.c.bf16 %v588, %v587
      %v602 = vpack.c.bf16 %v590, %v589
      %v603 = vpack.c.bf16 %v592, %v591
      %v604 = vpack.c.bf16 %v594, %v593
      %v605 = vpack.c.bf16 %v596, %v595
      %v606 = vpack.c.bf16 %v598, %v597
      %v607 = vld [vmem:[%s3] sm:$0xf]
      %v608 = vld [vmem:[%s3 + $0x4] sm:$0xf]
      %v609 = vld [vmem:[%s3 + $0x8] sm:$0xf]
      %v610 = vld [vmem:[%s3 + $0xc] sm:$0xf]
      %v611 = vld [vmem:[%s3 + $0x10] sm:$0xf]
      %v612 = vld [vmem:[%s3 + $0x14] sm:$0xf]
      %v613 = vld [vmem:[%s3 + $0x18] sm:$0xf]
      %v614 = vld [vmem:[%s3 + $0x1c] sm:$0xf]
      %v615 = vld [vmem:[%s3 + $0x20] sm:$0xf]
      %v616 = vld [vmem:[%s3 + $0x24] sm:$0xf]
      %v617 = vld [vmem:[%s3 + $0x28] sm:$0xf]
      %v618 = vld [vmem:[%s3 + $0x2c] sm:$0xf]
      %v619 = vld [vmem:[%s3 + $0x30] sm:$0xf]
      %v620 = vld [vmem:[%s3 + $0x34] sm:$0xf]
      %v621 = vld [vmem:[%s3 + $0x38] sm:$0xf]
      %v622 = vld [vmem:[%s3 + $0x3c] sm:$0xf]
      %v623 = vld [vmem:[%s4] sm:$0x1]
      %v625 = vlaneseq
      %v626 = vshrl.u32 %v625, 7
      %v627 = vsub.s32 0, %v626
      %v628 = vrot.slane %v623, %v627
      %v646 = vunpack.c.l.b16 %v607
      %v647 = vunpack.c.l.b16 %v608
      %v648 = vunpack.c.l.b16 %v609
      %v649 = vunpack.c.l.b16 %v610
      %v650 = vunpack.c.l.b16 %v611
      %v651 = vunpack.c.l.b16 %v612
      %v652 = vunpack.c.l.b16 %v613
      %v653 = vunpack.c.l.b16 %v614
      %v654 = vunpack.c.l.b16 %v615
      %v655 = vunpack.c.l.b16 %v616
      %v656 = vunpack.c.l.b16 %v617
      %v657 = vunpack.c.l.b16 %v618
      %v658 = vunpack.c.l.b16 %v619
      %v659 = vunpack.c.l.b16 %v620
      %v660 = vunpack.c.l.b16 %v621
      %v661 = vunpack.c.l.b16 %v622
      %v662 = vpack.c.b16 %v647, %v646
      %v663 = vpack.c.b16 %v649, %v648
      %v664 = vpack.c.b16 %v651, %v650
      %v665 = vpack.c.b16 %v653, %v652
      %v666 = vpack.c.b16 %v655, %v654
      %v667 = vpack.c.b16 %v657, %v656
      %v668 = vpack.c.b16 %v659, %v658
      %v669 = vpack.c.b16 %v661, %v660
      %678 = vmatprep.subr.bf16.mxu0 0
      %679 = vmatpush1.bf16.msra.mxu0 %v662
      %680 = vmatprep.subr.bf16.mxu0 0
      %681 = vmatpush1.bf16.msra.mxu0 %v663
      %682 = vmatprep.subr.bf16.mxu0 0
      %683 = vmatpush1.bf16.msra.mxu0 %v664
      %684 = vmatprep.subr.bf16.mxu0 0
      %685 = vmatpush1.bf16.msra.mxu0 %v665
      %686 = vmatprep.subr.bf16.mxu0 0
      %687 = vmatpush1.bf16.msra.mxu0 %v666
      %688 = vmatprep.subr.bf16.mxu0 0
      %689 = vmatpush1.bf16.msra.mxu0 %v667
      %690 = vmatprep.subr.bf16.mxu0 0
      %691 = vmatpush1.bf16.msra.mxu0 %v668
      %692 = vmatprep.subr.bf16.mxu0 0
      %693 = vmatpush1.bf16.msra.mxu0 %v669
      %694 = vmatprep.subr.bf16.mxu0 0
      %695 = vmatpush1.bf16.msra.mxu0 0
      %696 = vmatprep.subr.bf16.mxu0 0
      %697 = vmatpush1.bf16.msra.mxu0 0
      %698 = vmatprep.subr.bf16.mxu0 0
      %699 = vmatpush1.bf16.msra.mxu0 0
      %700 = vmatprep.subr.bf16.mxu0 0
      %701 = vmatpush1.bf16.msra.mxu0 0
      %702 = vmatprep.subr.bf16.mxu0 0
      %703 = vmatpush1.bf16.msra.mxu0 0
      %704 = vmatprep.subr.bf16.mxu0 0
      %705 = vmatpush1.bf16.msra.mxu0 0
      %706 = vmatprep.subr.bf16.mxu0 0
      %707 = vmatpush1.bf16.msra.mxu0 0
      %708 = vmatprep.subr.bf16.mxu0 0
      %709 = vmatpush1.bf16.msra.mxu0 0
      %710 = vmatprep.mubr.bf16.mxu0 0
      %711 = vmatmul.mubr.bf16.gmra.mrb[0].mxu0 %v599
      %v712 = vpop.f32.mrb[0].mxu0
      %v713 = vadd.f32 %v628, %v712
      %v714 = vpop.f32.mrb[0].mxu0
      %v715 = vpop.f32.mrb[0].mxu0
      %v716 = vadd.f32 %v628, %v715
      %v717 = vpop.f32.mrb[0].mxu0
      %718 = vmatprep.mubr.bf16.mxu0 0
      %719 = vmatmul.mubr.bf16.gmra.mrb[0].mxu0 %v600
      %v720 = vpop.f32.mrb[0].mxu0
      %v721 = vadd.f32 %v628, %v720
      %v722 = vpop.f32.mrb[0].mxu0
      %v723 = vpop.f32.mrb[0].mxu0
      %v724 = vadd.f32 %v628, %v723
      %v725 = vpop.f32.mrb[0].mxu0
      %726 = vmatprep.mubr.bf16.mxu0 0
      %727 = vmatmul.mubr.bf16.gmra.mrb[0].mxu0 %v601
      %v728 = vpop.f32.mrb[0].mxu0
      %v729 = vadd.f32 %v628, %v728
      %v730 = vpop.f32.mrb[0].mxu0
      %v731 = vpop.f32.mrb[0].mxu0
      %v732 = vadd.f32 %v628, %v731
      %v733 = vpop.f32.mrb[0].mxu0
      %734 = vmatprep.mubr.bf16.mxu0 0
      %735 = vmatmul.mubr.bf16.gmra.mrb[0].mxu0 %v602
      %v736 = vpop.f32.mrb[0].mxu0
      %v737 = vadd.f32 %v628, %v736
      %v738 = vpop.f32.mrb[0].mxu0
      %v739 = vpop.f32.mrb[0].mxu0
      %v740 = vadd.f32 %v628, %v739
      %v741 = vpop.f32.mrb[0].mxu0
      %742 = vmatprep.mubr.bf16.mxu0 0
      %743 = vmatmul.mubr.bf16.gmra.mrb[0].mxu0 %v603
      %v744 = vpop.f32.mrb[0].mxu0
      %v745 = vadd.f32 %v628, %v744
      %v746 = vpop.f32.mrb[0].mxu0
      %v747 = vpop.f32.mrb[0].mxu0
      %v748 = vadd.f32 %v628, %v747
      %v749 = vpop.f32.mrb[0].mxu0
      %750 = vmatprep.mubr.bf16.mxu0 0
      %751 = vmatmul.mubr.bf16.gmra.mrb[0].mxu0 %v604
      %v752 = vpop.f32.mrb[0].mxu0
      %v753 = vadd.f32 %v628, %v752
      %v754 = vpop.f32.mrb[0].mxu0
      %v755 = vpop.f32.mrb[0].mxu0
      %v756 = vadd.f32 %v628, %v755
      %v757 = vpop.f32.mrb[0].mxu0
      %758 = vmatprep.mubr.bf16.mxu0 0
      %759 = vmatmul.mubr.bf16.gmra.mrb[0].mxu0 %v605
      %v760 = vpop.f32.mrb[0].mxu0
      %v761 = vadd.f32 %v628, %v760
      %v762 = vpop.f32.mrb[0].mxu0
      %v763 = vpop.f32.mrb[0].mxu0
      %v764 = vadd.f32 %v628, %v763
      %v765 = vpop.f32.mrb[0].mxu0
      %766 = vmatprep.mubr.bf16.mxu0 0
      %767 = vmatmul.mubr.bf16.gmra.mrb[0].mxu0 %v606
      %v768 = vpop.f32.mrb[0].mxu0
      %v769 = vadd.f32 %v628, %v768
      %v770 = vpop.f32.mrb[0].mxu0
      %v771 = vpop.f32.mrb[0].mxu0
      %v772 = vadd.f32 %v628, %v771
      %v773 = vpop.f32.mrb[0].mxu0
      %774 = vdwg.mxu0
      %v775 = vmax.f32 %v713, 0.0
      %v776 = vmax.f32 %v716, 0.0
      %v777 = vmax.f32 %v721, 0.0
      %v778 = vmax.f32 %v724, 0.0
      %v779 = vmax.f32 %v729, 0.0
      %v780 = vmax.f32 %v732, 0.0
      %v781 = vmax.f32 %v737, 0.0
      %v782 = vmax.f32 %v740, 0.0
      %v783 = vmax.f32 %v745, 0.0
      %v784 = vmax.f32 %v748, 0.0
      %v785 = vmax.f32 %v753, 0.0
      %v786 = vmax.f32 %v756, 0.0
      %v787 = vmax.f32 %v761, 0.0
      %v788 = vmax.f32 %v764, 0.0
      %v789 = vmax.f32 %v769, 0.0
      %v790 = vmax.f32 %v772, 0.0
      %v791 = vpack.c.bf16 %v776, %v775
      %v792 = vpack.c.bf16 %v778, %v777
      %v793 = vpack.c.bf16 %v780, %v779
      %v794 = vpack.c.bf16 %v782, %v781
      %v795 = vpack.c.bf16 %v784, %v783
      %v796 = vpack.c.bf16 %v786, %v785
      %v797 = vpack.c.bf16 %v788, %v787
      %v798 = vpack.c.bf16 %v790, %v789
      %v799 = vld [vmem:[%s5] sm:$0xf]
      %v800 = vld [vmem:[%s5 + $0x4] sm:$0xf]
      %v801 = vld [vmem:[%s5 + $0x8] sm:$0xf]
      %v802 = vld [vmem:[%s5 + $0xc] sm:$0xf]
      %v803 = vld [vmem:[%s5 + $0x10] sm:$0xf]
      %v804 = vld [vmem:[%s5 + $0x14] sm:$0xf]
      %v805 = vld [vmem:[%s5 + $0x18] sm:$0xf]
      %v806 = vld [vmem:[%s5 + $0x1c] sm:$0xf]
      %v807 = vld [vmem:[%s6] sm:$0x1]
      %v809 = vlaneseq
      %v810 = vshrl.u32 %v809, 7
      %v811 = vsub.s32 0, %v810
      %v812 = vrot.slane %v807, %v811
      %v822 = vunpack.c.l.b16 %v799
      %v823 = vunpack.c.l.b16 %v800
      %v824 = vunpack.c.l.b16 %v801
      %v825 = vunpack.c.l.b16 %v802
      %v826 = vunpack.c.l.b16 %v803
      %v827 = vunpack.c.l.b16 %v804
      %v828 = vunpack.c.l.b16 %v805
      %v829 = vunpack.c.l.b16 %v806
      %v830 = vpack.c.b16 %v823, %v822
      %v831 = vpack.c.b16 %v825, %v824
      %v832 = vpack.c.b16 %v827, %v826
      %v833 = vpack.c.b16 %v829, %v828
      %vm838 = vcmask 523264
      %v840 = vsel %vm838, %v791, 0
      %v843 = vsel %vm838, %v792, 0
      %v846 = vsel %vm838, %v793, 0
      %v849 = vsel %vm838, %v794, 0
      %v852 = vsel %vm838, %v795, 0
      %v855 = vsel %vm838, %v796, 0
      %v858 = vsel %vm838, %v797, 0
      %v861 = vsel %vm838, %v798, 0
      %863 = vmatprep.subr.bf16.mxu0 0
      %864 = vmatpush1.bf16.msra.mxu0 %v830
      %865 = vmatprep.subr.bf16.mxu0 0
      %866 = vmatpush1.bf16.msra.mxu0 %v831
      %867 = vmatprep.subr.bf16.mxu0 0
      %868 = vmatpush1.bf16.msra.mxu0 %v832
      %869 = vmatprep.subr.bf16.mxu0 0
      %870 = vmatpush1.bf16.msra.mxu0 %v833
      %871 = vmatprep.subr.bf16.mxu0 0
      %872 = vmatpush1.bf16.msra.mxu0 0
      %873 = vmatprep.subr.bf16.mxu0 0
      %874 = vmatpush1.bf16.msra.mxu0 0
      %875 = vmatprep.subr.bf16.mxu0 0
      %876 = vmatpush1.bf16.msra.mxu0 0
      %877 = vmatprep.subr.bf16.mxu0 0
      %878 = vmatpush1.bf16.msra.mxu0 0
      %879 = vmatprep.subr.bf16.mxu0 0
      %880 = vmatpush1.bf16.msra.mxu0 0
      %881 = vmatprep.subr.bf16.mxu0 0
      %882 = vmatpush1.bf16.msra.mxu0 0
      %883 = vmatprep.subr.bf16.mxu0 0
      %884 = vmatpush1.bf16.msra.mxu0 0
      %885 = vmatprep.subr.bf16.mxu0 0
      %886 = vmatpush1.bf16.msra.mxu0 0
      %887 = vmatprep.subr.bf16.mxu0 0
      %888 = vmatpush1.bf16.msra.mxu0 0
      %889 = vmatprep.subr.bf16.mxu0 0
      %890 = vmatpush1.bf16.msra.mxu0 0
      %891 = vmatprep.subr.bf16.mxu0 0
      %892 = vmatpush1.bf16.msra.mxu0 0
      %893 = vmatprep.subr.bf16.mxu0 0
      %894 = vmatpush1.bf16.msra.mxu0 0
      %895 = vmatprep.mubr.bf16.mxu0 0
      %896 = vmatmul.mubr.bf16.gmra.mrb[0].mxu0 %v840
      %v897 = vpop.f32.mrb[0].mxu0
      %v898 = vadd.f32 %v812, %v897
      %v899 = vpop.f32.mrb[0].mxu0
      %v900 = vpop.f32.mrb[0].mxu0
      %v901 = vadd.f32 %v812, %v900
      %v902 = vpop.f32.mrb[0].mxu0
      %903 = vmatprep.mubr.bf16.mxu0 0
      %904 = vmatmul.mubr.bf16.gmra.mrb[0].mxu0 %v843
      %v905 = vpop.f32.mrb[0].mxu0
      %v906 = vadd.f32 %v812, %v905
      %v907 = vpop.f32.mrb[0].mxu0
      %v908 = vpop.f32.mrb[0].mxu0
      %v909 = vadd.f32 %v812, %v908
      %v910 = vpop.f32.mrb[0].mxu0
      %911 = vmatprep.mubr.bf16.mxu0 0
      %912 = vmatmul.mubr.bf16.gmra.mrb[0].mxu0 %v846
      %v913 = vpop.f32.mrb[0].mxu0
      %v914 = vadd.f32 %v812, %v913
      %v915 = vpop.f32.mrb[0].mxu0
      %v916 = vpop.f32.mrb[0].mxu0
      %v917 = vadd.f32 %v812, %v916
      %v918 = vpop.f32.mrb[0].mxu0
      %919 = vmatprep.mubr.bf16.mxu0 0
      %920 = vmatmul.mubr.bf16.gmra.mrb[0].mxu0 %v849
      %v921 = vpop.f32.mrb[0].mxu0
      %v922 = vadd.f32 %v812, %v921
      %v923 = vpop.f32.mrb[0].mxu0
      %v924 = vpop.f32.mrb[0].mxu0
      %v925 = vadd.f32 %v812, %v924
      %v926 = vpop.f32.mrb[0].mxu0
      %927 = vmatprep.mubr.bf16.mxu0 0
      %928 = vmatmul.mubr.bf16.gmra.mrb[0].mxu0 %v852
      %v929 = vpop.f32.mrb[0].mxu0
      %v930 = vadd.f32 %v812, %v929
      %v931 = vpop.f32.mrb[0].mxu0
      %v932 = vpop.f32.mrb[0].mxu0
      %v933 = vadd.f32 %v812, %v932
      %v934 = vpop.f32.mrb[0].mxu0
      %935 = vmatprep.mubr.bf16.mxu0 0
      %936 = vmatmul.mubr.bf16.gmra.mrb[0].mxu0 %v855
      %v937 = vpop.f32.mrb[0].mxu0
      %v938 = vadd.f32 %v812, %v937
      %v939 = vpop.f32.mrb[0].mxu0
      %v940 = vpop.f32.mrb[0].mxu0
      %v941 = vadd.f32 %v812, %v940
      %v942 = vpop.f32.mrb[0].mxu0
      %943 = vmatprep.mubr.bf16.mxu0 0
      %944 = vmatmul.mubr.bf16.gmra.mrb[0].mxu0 %v858
      %v945 = vpop.f32.mrb[0].mxu0
      %v946 = vadd.f32 %v812, %v945
      %v947 = vpop.f32.mrb[0].mxu0
      %v948 = vpop.f32.mrb[0].mxu0
      %v949 = vadd.f32 %v812, %v948
      %v950 = vpop.f32.mrb[0].mxu0
      %951 = vmatprep.mubr.bf16.mxu0 0
      %952 = vmatmul.mubr.bf16.gmra.mrb[0].mxu0 %v861
      %v953 = vpop.f32.mrb[0].mxu0
      %v954 = vadd.f32 %v812, %v953
      %v955 = vpop.f32.mrb[0].mxu0
      %v956 = vpop.f32.mrb[0].mxu0
      %v957 = vadd.f32 %v812, %v956
      %v958 = vpop.f32.mrb[0].mxu0
      %959 = vdwg.mxu0
      %vm960 = vcmask 195584
      %961 = vst.msk [vmem:[%s283] sm:$0xff] %vm960, %v898
      %962 = vst.msk [vmem:[%s283 + $0x8] sm:$0xff] %vm960, %v901
      %963 = vst.msk [vmem:[%s283 + $0x10] sm:$0xff] %vm960, %v906
      %964 = vst.msk [vmem:[%s283 + $0x18] sm:$0xff] %vm960, %v909
      %965 = vst.msk [vmem:[%s283 + $0x20] sm:$0xff] %vm960, %v914
      %966 = vst.msk [vmem:[%s283 + $0x28] sm:$0xff] %vm960, %v917
      %967 = vst.msk [vmem:[%s283 + $0x30] sm:$0xff] %vm960, %v922
      %968 = vst.msk [vmem:[%s283 + $0x38] sm:$0xff] %vm960, %v925
      %969 = vst.msk [vmem:[%s283 + $0x40] sm:$0xff] %vm960, %v930
      %970 = vst.msk [vmem:[%s283 + $0x48] sm:$0xff] %vm960, %v933
      %971 = vst.msk [vmem:[%s283 + $0x50] sm:$0xff] %vm960, %v938
      %972 = vst.msk [vmem:[%s283 + $0x58] sm:$0xff] %vm960, %v941
      %973 = vst.msk [vmem:[%s283 + $0x60] sm:$0xff] %vm960, %v946
      %974 = vst.msk [vmem:[%s283 + $0x68] sm:$0xff] %vm960, %v949
      %975 = vst.msk [vmem:[%s283 + $0x70] sm:$0xff] %vm960, %v954
      %976 = vst.msk [vmem:[%s283 + $0x78] sm:$0xff] %vm960, %v957
      %s977 = smul.u32 16, %s18
      %p978 = scmp.lt.s32.totalorder %s977, 31
      %s979 = scalar_select %p978, %s977, 31
      %s980 = smul.addr %s979, 8
      %s981 = scalar_lea.vmem %s7, %s980
      // Predicated region
      $region49: #{one_hidden_layer_reg.1} parent=47 // pred_check
        %p982 = pneg %p188
      $region50: #{one_hidden_layer_reg.1} parent=47 // pred_check_branch
        %984 = sbr.rel (%p982) target = $region52
      $region51: #{one_hidden_layer_reg.1} parent=47 // pred_region
        %s985 = smul.u32 16, %s18
      $region52: #{one_hidden_layer_reg.1} parent=47 // pred_fallthru
        _
    $region48: #{one_hidden_layer_reg.1} parent=5 // pred_fallthru
      _
    %p986 = scmp.le.s32.totalorder 2, %s13
    // Predicated region
    $region53: #{one_hidden_layer_reg.1} parent=5 // pred_check
      %p987 = pneg %p986
    $region54: #{one_hidden_layer_reg.1} parent=5 // pred_check_branch
      %989 = sbr.rel (%p987) target = $region56
    $region55: #{one_hidden_layer_reg.1} parent=5 // pred_region
      %s990 = ssub.s32 %s13, 2
      // Predicated region
      $region57: #{one_hidden_layer_reg.1} parent=55 // pred_check
        %p991 = pneg %p194
      $region58: #{one_hidden_layer_reg.1} parent=55 // pred_check_branch
        %993 = sbr.rel (%p991) target = $region60
      $region59: #{one_hidden_layer_reg.1} parent=55 // pred_region
        %s994 = smul.u32 16, %s19
        %p995 = scmp.lt.s32.totalorder %s994, 31
        %s996 = scalar_select %p995, %s994, 31
        %s997 = smul.addr %s996, 8
        %s998 = scalar_lea.vmem %s7, %s997
      $region60: #{one_hidden_layer_reg.1} parent=55 // pred_fallthru
        _
    $region56: #{one_hidden_layer_reg.1} parent=5 // pred_fallthru
      _
  $region6: #{one_hidden_layer_reg.1} parent=0 // loop_footer
    %s17 = sadd.s32 1, %s13
  $region7: #{one_hidden_layer_reg.1} parent=0 // loop_footer_branch
    %12 = sbr.rel target = $region3
  $region8: #{one_hidden_layer_reg.1} parent=0 // loop_exit
    _

</llo_original>
